<compile_context>
chip_gen: v7x
topology: tpu7x:2x2x1
jax: 0.10.0
libtpu: 0.0.40
codegen_flags: <defaults>
</compile_context>

<pallas_src>
import jax
import jax.numpy as jnp
from jax import lax
from jax.experimental import pallas as pl
from jax.experimental.pallas import tpu as pltpu


def mlp_kernel(x_ref, w1_ref, b1_ref, w2_ref, b2_ref, w3_ref, b3_ref, o_ref):
    # x_ref: (TB, 20) — natural row-major batch block.
    x = x_ref[...]

    # h1 = W1 @ x^T: contract w1 dim 1 (20) with x dim 1 (20) -> (10, TB).
    # Batch lands on the lane axis, so all downstream math is lane-dense.
    h1 = lax.dot_general(
        w1_ref[...], x,
        dimension_numbers=(((1,), (1,)), ((), ())),
        preferred_element_type=jnp.float32)
    h1 = jnp.maximum(h1 + b1_ref[...], 0.0)              # (10, TB)

    h2 = jnp.dot(w2_ref[...], h1, preferred_element_type=jnp.float32)
    h2 = jnp.maximum(h2 + b2_ref[...], 0.0)              # (5, TB)

    h3 = jnp.dot(w3_ref[...], h2, preferred_element_type=jnp.float32)
    o_ref[...] = (h3 + b3_ref[...]).astype(o_ref.dtype)  # (2, TB)


def _round_up(x, m):
    return (x + m - 1) // m * m


# Lane-tile cap.  Working set ~1.3 KB/lane (lane-padded double-buffered x block
# + intermediates), so 16K lanes -> ~20 MB VMEM: safe on v5e/v6e (128 MiB) and
# v7x (64 MiB) while keeping per-step DMA (~1.4 MB) >> 0.35 us step overhead.
_TB_CAP = 16 * 1024


def _choose_tb(B):
    if B <= 128:
        # Tiny batch: a single full-array block (block dims == array dims
        # always satisfy the (8, 128) divisibility rule).
        return B
    TB = min(_TB_CAP, _round_up(B, 128))
    # v7x megacore: make sure there are >= 2 grid steps to shard across the
    # 2 TensorCores when the whole batch would otherwise fit in one block.
    if B > 256 and pl.cdiv(B, TB) < 2:
        TB = _round_up(pl.cdiv(B, 2), 128)
    return TB


@jax.jit
def mlp_forward(x, params):
    """x: (B, 20) float32 -> (B, 2) float32."""
    w1, b1, w2, b2, w3, b3 = params          # PyTorch shapes: w (out,in), b (out,)
    B, D_in = x.shape
    D_out = w3.shape[0]

    # Column-vector biases broadcast over the lane (batch) axis.
    b1c = b1.reshape(-1, 1)                  # (10, 1)
    b2c = b2.reshape(-1, 1)                  # (5, 1)
    b3c = b3.reshape(-1, 1)                  # (2, 1)

    TB = _choose_tb(B)
    n_blocks = pl.cdiv(B, TB)

    # x is tiled along the batch (sublane) axis in its natural layout; the
    # output is tiled along its lane axis.  Ragged last blocks are clipped by
    # Pallas on both the input DMA and the output writeback.
    x_spec = pl.BlockSpec((TB, D_in), lambda i: (i, 0))
    out_spec = pl.BlockSpec((D_out, TB), lambda i: (0, i))
    # Weights/biases use a constant block index -> stay VMEM-resident.
    resident = lambda a: pl.BlockSpec(a.shape, lambda i: (0, 0))

    flops = 2 * B * (20 * 10 + 10 * 5 + 5 * 2)
    weight_bytes = sum(int(a.size) * 4 for a in (w1, b1, w2, b2, w3, b3))
    bytes_accessed = B * (D_in + D_out) * 4 + weight_bytes

    out_t = pl.pallas_call(
        mlp_kernel,
        out_shape=jax.ShapeDtypeStruct((D_out, B), jnp.float32),
        grid=(n_blocks,),
        in_specs=[
            x_spec,
            resident(w1), resident(b1c),
            resident(w2), resident(b2c),
            resident(w3), resident(b3c),
        ],
        out_specs=out_spec,
        compiler_params=pltpu.CompilerParams(
            dimension_semantics=("parallel",),
            vmem_limit_bytes=48 * 1024 * 1024,
        ),
        cost_estimate=pl.CostEstimate(
            flops=flops, transcendentals=0, bytes_accessed=bytes_accessed
        ),
    )(x, w1, b1c, w2, b2c, w3, b3c)

    # (2, B) -> (B, 2): only 8 B/row, ~10x cheaper than transposing the input.
    return jnp.transpose(out_t)


def init_params(key):
    """Deterministic init matching nn.Linear (w: (out,in), b: (out,))."""
    ks = jax.random.split(key, 6)

    def linear_init(kw, kb, fan_in, fan_out):
        bound = 1.0 / jnp.sqrt(fan_in)
        w = jax.random.uniform(kw, (fan_out, fan_in), jnp.float32, -bound, bound)
        b = jax.random.uniform(kb, (fan_out,), jnp.float32, -bound, bound)
        return w, b

    w1, b1 = linear_init(ks[0], ks[1], 20, 10)
    w2, b2 = linear_init(ks[2], ks[3], 10, 5)
    w3, b3 = linear_init(ks[4], ks[5], 5, 2)
    return (w1, b1, w2, b2, w3, b3)


def mlp_reference(x, params):
    """Pure-JAX reference matching the PyTorch forward."""
    w1, b1, w2, b2, w3, b3 = params
    h = jnp.maximum(x @ w1.T + b1, 0.0)
    h = jnp.maximum(h @ w2.T + b2, 0.0)
    return h @ w3.T + b3


if __name__ == "__main__":
    key = jax.random.PRNGKey(0)
    k_x, k_p = jax.random.split(key)
    params = init_params(k_p)

    # Small batch (single full block) + a multi-block batch with a ragged
    # last block, exercising both code paths.
    for B in (8, 300):
        x = jax.random.normal(jax.random.fold_in(k_x, B), (B, 20),
                              dtype=jnp.float32)
        out = jax.block_until_ready(mlp_forward(x, params))
        ref = mlp_reference(x, params)
        assert out.shape == (B, 2), out.shape
        assert jnp.allclose(out, ref, atol=1e-4, rtol=1e-4), \
            f"mismatch vs reference at B={B}"

    print("KERNEL_OK")
</pallas_src>

<mosaic_0001>
module attributes {stable_mosaic.version = 11 : i64} {
  func.func @mlp_kernel(%arg0: i32, %arg1: memref<8x20xf32, #tpu.memory_space<vmem>>, %arg2: memref<10x20xf32, #tpu.memory_space<vmem>>, %arg3: memref<10x1xf32, #tpu.memory_space<vmem>>, %arg4: memref<5x10xf32, #tpu.memory_space<vmem>>, %arg5: memref<5x1xf32, #tpu.memory_space<vmem>>, %arg6: memref<2x5xf32, #tpu.memory_space<vmem>>, %arg7: memref<2x1xf32, #tpu.memory_space<vmem>>, %arg8: memref<2x8xf32, #tpu.memory_space<vmem>>) attributes {dimension_semantics = [#tpu.dimension_semantics<parallel>], iteration_bounds = array<i64: 1>, scalar_prefetch = 0 : i64, scratch_operands = 0 : i64, tpu.core_type = #tpu.core_type<tc>, window_params = [{transform_indices = @transform_0, window_bounds = array<i64: 8, 20>}, {pipeline_mode = #tpu.pipeline_mode<synchronous>, transform_indices = @transform_1, window_bounds = array<i64: 10, 20>}, {pipeline_mode = #tpu.pipeline_mode<synchronous>, transform_indices = @transform_2, window_bounds = array<i64: 10, 1>}, {pipeline_mode = #tpu.pipeline_mode<synchronous>, transform_indices = @transform_3, window_bounds = array<i64: 5, 10>}, {pipeline_mode = #tpu.pipeline_mode<synchronous>, transform_indices = @transform_4, window_bounds = array<i64: 5, 1>}, {pipeline_mode = #tpu.pipeline_mode<synchronous>, transform_indices = @transform_5, window_bounds = array<i64: 2, 5>}, {pipeline_mode = #tpu.pipeline_mode<synchronous>, transform_indices = @transform_6, window_bounds = array<i64: 2, 1>}, {transform_indices = @transform_7, window_bounds = array<i64: 2, 8>}]} {
    %c0 = arith.constant 0 : index
    %c0_0 = arith.constant 0 : index
    %0 = vector.load %arg1[%c0, %c0_0] : memref<8x20xf32, #tpu.memory_space<vmem>>, vector<8x20xf32>
    %c0_1 = arith.constant 0 : index
    %c0_2 = arith.constant 0 : index
    %1 = vector.load %arg2[%c0_1, %c0_2] : memref<10x20xf32, #tpu.memory_space<vmem>>, vector<10x20xf32>
    %cst = arith.constant dense<0.000000e+00> : vector<10x8xf32>
    %2 = tpu.matmul %1, %0, %cst {dimension_numbers = #tpu.dot_dimension_numbers<[1], [1], [0], [0], [0, 0, 1, 0], [], []>} : vector<10x20xf32>, vector<8x20xf32>, vector<10x8xf32> -> vector<10x8xf32>
    %c0_3 = arith.constant 0 : index
    %c0_4 = arith.constant 0 : index
    %3 = vector.load %arg3[%c0_3, %c0_4] : memref<10x1xf32, #tpu.memory_space<vmem>>, vector<10x1xf32>
    %4 = vector.broadcast %3 : vector<10x1xf32> to vector<10x8xf32>
    %5 = arith.addf %2, %4 : vector<10x8xf32>
    %cst_5 = arith.constant 0.000000e+00 : f32
    %6 = vector.broadcast %cst_5 : f32 to vector<10x8xf32>
    %7 = arith.maximumf %5, %6 : vector<10x8xf32>
    %c0_6 = arith.constant 0 : index
    %c0_7 = arith.constant 0 : index
    %8 = vector.load %arg4[%c0_6, %c0_7] : memref<5x10xf32, #tpu.memory_space<vmem>>, vector<5x10xf32>
    %cst_8 = arith.constant dense<0.000000e+00> : vector<5x8xf32>
    %9 = tpu.matmul %8, %7, %cst_8 {dimension_numbers = #tpu.dot_dimension_numbers<[1], [0], [0], [1], [0, 0, 1, 1], [], []>} : vector<5x10xf32>, vector<10x8xf32>, vector<5x8xf32> -> vector<5x8xf32>
    %c0_9 = arith.constant 0 : index
    %c0_10 = arith.constant 0 : index
    %10 = vector.load %arg5[%c0_9, %c0_10] : memref<5x1xf32, #tpu.memory_space<vmem>>, vector<5x1xf32>
    %11 = vector.broadcast %10 : vector<5x1xf32> to vector<5x8xf32>
    %12 = arith.addf %9, %11 : vector<5x8xf32>
    %cst_11 = arith.constant 0.000000e+00 : f32
    %13 = vector.broadcast %cst_11 : f32 to vector<5x8xf32>
    %14 = arith.maximumf %12, %13 : vector<5x8xf32>
    %c0_12 = arith.constant 0 : index
    %c0_13 = arith.constant 0 : index
    %15 = vector.load %arg6[%c0_12, %c0_13] : memref<2x5xf32, #tpu.memory_space<vmem>>, vector<2x5xf32>
    %cst_14 = arith.constant dense<0.000000e+00> : vector<2x8xf32>
    %16 = tpu.matmul %15, %14, %cst_14 {dimension_numbers = #tpu.dot_dimension_numbers<[1], [0], [0], [1], [0, 0, 1, 1], [], []>} : vector<2x5xf32>, vector<5x8xf32>, vector<2x8xf32> -> vector<2x8xf32>
    %c0_15 = arith.constant 0 : index
    %c0_16 = arith.constant 0 : index
    %17 = vector.load %arg7[%c0_15, %c0_16] : memref<2x1xf32, #tpu.memory_space<vmem>>, vector<2x1xf32>
    %18 = vector.broadcast %17 : vector<2x1xf32> to vector<2x8xf32>
    %19 = arith.addf %16, %18 : vector<2x8xf32>
    %c0_17 = arith.constant 0 : index
    %c0_18 = arith.constant 0 : index
    %20 = vector.load %arg8[%c0_17, %c0_18] : memref<2x8xf32, #tpu.memory_space<vmem>>, vector<2x8xf32>
    tpu.vector_store %arg8[%c0_17, %c0_18], %19 {strides = array<i32>} : memref<2x8xf32, #tpu.memory_space<vmem>>, vector<2x8xf32>,
    return
  }
  func.func @transform_0(%arg0: i32) -> (i32, i32) {
    %c0_i32 = arith.constant 0 : i32
    %c0_i32_0 = arith.constant 0 : i32
    return %arg0, %c0_i32 : i32, i32
  }
  func.func @transform_1(%arg0: i32) -> (i32, i32) {
    %c0_i32 = arith.constant 0 : i32
    %c0_i32_0 = arith.constant 0 : i32
    %c0_i32_1 = arith.constant 0 : i32
    return %c0_i32, %c0_i32_0 : i32, i32
  }
  func.func @transform_2(%arg0: i32) -> (i32, i32) {
    %c0_i32 = arith.constant 0 : i32
    %c0_i32_0 = arith.constant 0 : i32
    %c0_i32_1 = arith.constant 0 : i32
    return %c0_i32, %c0_i32_0 : i32, i32
  }
  func.func @transform_3(%arg0: i32) -> (i32, i32) {
    %c0_i32 = arith.constant 0 : i32
    %c0_i32_0 = arith.constant 0 : i32
    %c0_i32_1 = arith.constant 0 : i32
    return %c0_i32, %c0_i32_0 : i32, i32
  }
  func.func @transform_4(%arg0: i32) -> (i32, i32) {
    %c0_i32 = arith.constant 0 : i32
    %c0_i32_0 = arith.constant 0 : i32
    %c0_i32_1 = arith.constant 0 : i32
    return %c0_i32, %c0_i32_0 : i32, i32
  }
  func.func @transform_5(%arg0: i32) -> (i32, i32) {
    %c0_i32 = arith.constant 0 : i32
    %c0_i32_0 = arith.constant 0 : i32
    %c0_i32_1 = arith.constant 0 : i32
    return %c0_i32, %c0_i32_0 : i32, i32
  }
  func.func @transform_6(%arg0: i32) -> (i32, i32) {
    %c0_i32 = arith.constant 0 : i32
    %c0_i32_0 = arith.constant 0 : i32
    %c0_i32_1 = arith.constant 0 : i32
    return %c0_i32, %c0_i32_0 : i32, i32
  }
  func.func @transform_7(%arg0: i32) -> (i32, i32) {
    %c0_i32 = arith.constant 0 : i32
    %c0_i32_0 = arith.constant 0 : i32
    return %c0_i32, %arg0 : i32, i32
  }
}

</mosaic_0001>

<llo_original>
// kernel: mlp_forward.1
$region0: #{mlp_forward.1}
  #allocation0 [shape = 'u32[]', space=smem, size = 0x4, offset = 0x4, fixed_abs, tag = 'smem constant byte address 0x4 - core index']
  #allocation1 [shape = 'u32[144,128]{1,0:T(1,128)}', space=vmem, size = 0x12000, scoped, tag = 'internal scratch']
  %s0 = inlined_call_operand.vmem [shape: f32[8,20], index: 0, kind: input, shape index: {}]
  %s1 = inlined_call_operand.vmem [shape: f32[10,20], index: 1, kind: input, shape index: {}]
  %s2 = inlined_call_operand.vmem [shape: f32[10,1], index: 2, kind: input, shape index: {}]
  %s3 = inlined_call_operand.vmem [shape: f32[5,10], index: 3, kind: input, shape index: {}]
  %s4 = inlined_call_operand.vmem [shape: f32[5,1], index: 4, kind: input, shape index: {}]
  %s5 = inlined_call_operand.vmem [shape: f32[2,5], index: 5, kind: input, shape index: {}]
  %s6 = inlined_call_operand.vmem [shape: f32[2,1], index: 6, kind: input, shape index: {}]
  %s7 = inlined_call_operand.hbm [shape: f32[2,8], index: 7, kind: output, shape index: {}]
  %s8 = sld [smem:[#allocation0]]
  $region38: #{mlp_forward.1} parent=0
    _
  %s10 = ssub.s32 1, %s8
  %s11 = scalar_select 0, %s10, %s8
  $region1: #{mlp_forward.1} parent=0
    #allocation2 [shape = 'u8[1024]{0}', space=vmem, size = 0x400, scoped, tag = 'output window, operand 0, single buffered']
    #allocation3 [shape = 's32[1]{0}', space=sflag, size = 0x4, scoped, tag = 'scoped memory for mlp_forward.1']
    %12 = vsyncpa [#allocation3], 0
    // Predicated region
    $region2: #{mlp_forward.1} parent=1 // pred_check
      _
    $region3: #{mlp_forward.1} parent=1 // pred_check_branch
      %14 = sbr.rel (0) target = $region5
    $region4: #{mlp_forward.1} parent=1 // pred_region
      _
    $region5: #{mlp_forward.1} parent=1 // pred_fallthru
      _
    // Predicated region
    $region6: #{mlp_forward.1} parent=1 // pred_check
      _
    $region7: #{mlp_forward.1} parent=1 // pred_check_branch
      %16 = sbr.rel (0) target = $region9
    $region8: #{mlp_forward.1} parent=1 // pred_region
      _
    $region9: #{mlp_forward.1} parent=1 // pred_fallthru
      _
    // Predicated region
    $region10: #{mlp_forward.1} parent=1 // pred_check
      _
    $region11: #{mlp_forward.1} parent=1 // pred_check_branch
      %18 = sbr.rel (0) target = $region13
    $region12: #{mlp_forward.1} parent=1 // pred_region
      _
    $region13: #{mlp_forward.1} parent=1 // pred_fallthru
      _
    // Predicated region
    $region14: #{mlp_forward.1} parent=1 // pred_check
      _
    $region15: #{mlp_forward.1} parent=1 // pred_check_branch
      %20 = sbr.rel (0) target = $region17
    $region16: #{mlp_forward.1} parent=1 // pred_region
      _
    $region17: #{mlp_forward.1} parent=1 // pred_fallthru
      _
    // Predicated region
    $region18: #{mlp_forward.1} parent=1 // pred_check
      _
    $region19: #{mlp_forward.1} parent=1 // pred_check_branch
      %22 = sbr.rel (0) target = $region21
    $region20: #{mlp_forward.1} parent=1 // pred_region
      _
    $region21: #{mlp_forward.1} parent=1 // pred_fallthru
      _
    // Predicated region
    $region22: #{mlp_forward.1} parent=1 // pred_check
      _
    $region23: #{mlp_forward.1} parent=1 // pred_check_branch
      %24 = sbr.rel (0) target = $region25
    $region24: #{mlp_forward.1} parent=1 // pred_region
      _
    $region25: #{mlp_forward.1} parent=1 // pred_fallthru
      _
    // Predicated region
    $region26: #{mlp_forward.1} parent=1 // pred_check
      _
    $region27: #{mlp_forward.1} parent=1 // pred_check_branch
      %26 = sbr.rel (0) target = $region29
    $region28: #{mlp_forward.1} parent=1 // pred_region
      _
    $region29: #{mlp_forward.1} parent=1 // pred_fallthru
      _
    %v27 = vld [vmem:[%s0] sm:$0xff]
    %v28 = vld [vmem:[%s1] sm:$0xff]
    %v29 = vld [vmem:[%s1 + $0x8] sm:$0x3]
    %v30 = vld [vmem:[%s2] sm:$0xff]
    %v31 = vld [vmem:[%s2 + $0x8] sm:$0x3]
    %33 = vset.pattern.permute.xlu0 0
    %34 = vperm.xlu0 %33, %v30
    %v35 = vpop.permute.xlu0 %34
    %38 = vset.pattern.permute.xlu0 0
    %39 = vperm.xlu0 %38, %v31
    %v40 = vpop.permute.xlu0 %39
    %vm42 = vcmask 162816
    %v44 = vsel %vm42, %v28, 0
    %v47 = vsel %vm42, %v29, 0
    %v50 = vsel %vm42, %v27, 0
    %52 = vmatprep.subr.mxu0 0.0
    %53 = vmatpush1.xpose.msra.mxu0 %v50
    %54 = vmatprep.subr.mxu0 0.0
    %55 = vmatpush1.xpose.msra.mxu0 0.0
    %56 = vmatprep.subr.mxu0 0.0
    %57 = vmatpush1.xpose.msra.mxu0 0.0
    %58 = vmatprep.subr.mxu0 0.0
    %59 = vmatpush1.xpose.msra.mxu0 0.0
    %60 = vmatprep.subr.mxu0 0.0
    %61 = vmatpush1.xpose.msra.mxu0 0.0
    %62 = vmatprep.subr.mxu0 0.0
    %63 = vmatpush1.xpose.msra.mxu0 0.0
    %64 = vmatprep.subr.mxu0 0.0
    %65 = vmatpush1.xpose.msra.mxu0 0.0
    %66 = vmatprep.subr.mxu0 0.0
    %67 = vmatpush1.xpose.msra.mxu0 0.0
    %68 = vmatprep.subr.mxu0 0.0
    %69 = vmatpush1.xpose.msra.mxu0 0.0
    %70 = vmatprep.subr.mxu0 0.0
    %71 = vmatpush1.xpose.msra.mxu0 0.0
    %72 = vmatprep.subr.mxu0 0.0
    %73 = vmatpush1.xpose.msra.mxu0 0.0
    %74 = vmatprep.subr.mxu0 0.0
    %75 = vmatpush1.xpose.msra.mxu0 0.0
    %76 = vmatprep.subr.mxu0 0.0
    %77 = vmatpush1.xpose.msra.mxu0 0.0
    %78 = vmatprep.subr.mxu0 0.0
    %79 = vmatpush1.xpose.msra.mxu0 0.0
    %80 = vmatprep.subr.mxu0 0.0
    %81 = vmatpush1.xpose.msra.mxu0 0.0
    %82 = vmatprep.subr.mxu0 0.0
    %83 = vmatpush1.xpose.msra.mxu0 0.0
    %84 = vmatprep.subr.mxu0 0.0
    %85 = vmatpush1.xpose.msra.mxu0 0.0
    %86 = vmatprep.subr.mxu0 0.0
    %87 = vmatpush1.xpose.msra.mxu0 0.0
    %88 = vmatprep.subr.mxu0 0.0
    %89 = vmatpush1.xpose.msra.mxu0 0.0
    %90 = vmatprep.subr.mxu0 0.0
    %91 = vmatpush1.xpose.msra.mxu0 0.0
    %92 = vmatprep.subr.mxu0 0.0
    %93 = vmatpush1.xpose.msra.mxu0 0.0
    %94 = vmatprep.subr.mxu0 0.0
    %95 = vmatpush1.xpose.msra.mxu0 0.0
    %96 = vmatprep.subr.mxu0 0.0
    %97 = vmatpush1.xpose.msra.mxu0 0.0
    %98 = vmatprep.subr.mxu0 0.0
    %99 = vmatpush1.xpose.msra.mxu0 0.0
    %100 = vmatprep.subr.mxu0 0.0
    %101 = vmatpush1.xpose.msra.mxu0 0.0
    %102 = vmatprep.subr.mxu0 0.0
    %103 = vmatpush1.xpose.msra.mxu0 0.0
    %104 = vmatprep.subr.mxu0 0.0
    %105 = vmatpush1.xpose.msra.mxu0 0.0
    %106 = vmatprep.subr.mxu0 0.0
    %107 = vmatpush1.xpose.msra.mxu0 0.0
    %108 = vmatprep.subr.mxu0 0.0
    %109 = vmatpush1.xpose.msra.mxu0 0.0
    %110 = vmatprep.subr.mxu0 0.0
    %111 = vmatpush1.xpose.msra.mxu0 0.0
    %112 = vmatprep.subr.mxu0 0.0
    %113 = vmatpush1.xpose.msra.mxu0 0.0
    %114 = vmatprep.subr.mxu0 0.0
    %115 = vmatpush1.xpose.msra.mxu0 0.0
    %116 = vmatprep.mubr.f32.mxu0 0.0
    %117 = vmatmul.mubr.f32.gmra.mrb[0].mxu0 %v44
    %v118 = vpop.f32.mrb[0].mxu0
    %v119 = vadd.f32 %v35, %v118
    %v120 = vpop.f32.mrb[0].mxu0
    %121 = vmatprep.mubr.f32.mxu0 0.0
    %122 = vmatmul.mubr.f32.gmra.mrb[0].mxu0 %v47
    %v123 = vpop.f32.mrb[0].mxu0
    %v124 = vadd.f32 %v40, %v123
    %v125 = vpop.f32.mrb[0].mxu0
    %126 = vdwg.mxu0
    %v127 = vmax.f32 %v119, 0.0
    %v128 = vmax.f32 %v124, 0.0
    %v129 = vld [vmem:[%s3] sm:$0x1f]
    %v130 = vld [vmem:[%s4] sm:$0x1f]
    %132 = vset.pattern.permute.xlu0 0
    %133 = vperm.xlu0 %132, %v130
    %v134 = vpop.permute.xlu0 %133
    %vm136 = vcmask 80896
    %v138 = vsel %vm136, %v129, 0
    %vm140 = vcmask 1041408
    %v142 = vsel %vm140, %v128, 0
    %144 = vmatprep.subr.mxu0 0.0
    %145 = vmatpush1.msra.mxu0 %v127
    %146 = vmatprep.subr.mxu0 0.0
    %147 = vmatpush1.msra.mxu0 %v142
    %148 = vmatprep.subr.mxu0 0.0
    %149 = vmatpush1.msra.mxu0 0.0
    %150 = vmatprep.subr.mxu0 0.0
    %151 = vmatpush1.msra.mxu0 0.0
    %152 = vmatprep.subr.mxu0 0.0
    %153 = vmatpush1.msra.mxu0 0.0
    %154 = vmatprep.subr.mxu0 0.0
    %155 = vmatpush1.msra.mxu0 0.0
    %156 = vmatprep.subr.mxu0 0.0
    %157 = vmatpush1.msra.mxu0 0.0
    %158 = vmatprep.subr.mxu0 0.0
    %159 = vmatpush1.msra.mxu0 0.0
    %160 = vmatprep.subr.mxu0 0.0
    %161 = vmatpush1.msra.mxu0 0.0
    %162 = vmatprep.subr.mxu0 0.0
    %163 = vmatpush1.msra.mxu0 0.0
    %164 = vmatprep.subr.mxu0 0.0
    %165 = vmatpush1.msra.mxu0 0.0
    %166 = vmatprep.subr.mxu0 0.0
    %167 = vmatpush1.msra.mxu0 0.0
    %168 = vmatprep.subr.mxu0 0.0
    %169 = vmatpush1.msra.mxu0 0.0
    %170 = vmatprep.subr.mxu0 0.0
    %171 = vmatpush1.msra.mxu0 0.0
    %172 = vmatprep.subr.mxu0 0.0
    %173 = vmatpush1.msra.mxu0 0.0
    %174 = vmatprep.subr.mxu0 0.0
    %175 = vmatpush1.msra.mxu0 0.0
    %176 = vmatprep.subr.mxu0 0.0
    %177 = vmatpush1.msra.mxu0 0.0
    %178 = vmatprep.subr.mxu0 0.0
    %179 = vmatpush1.msra.mxu0 0.0
    %180 = vmatprep.subr.mxu0 0.0
    %181 = vmatpush1.msra.mxu0 0.0
    %182 = vmatprep.subr.mxu0 0.0
    %183 = vmatpush1.msra.mxu0 0.0
    %184 = vmatprep.subr.mxu0 0.0
    %185 = vmatpush1.msra.mxu0 0.0
    %186 = vmatprep.subr.mxu0 0.0
    %187 = vmatpush1.msra.mxu0 0.0
    %188 = vmatprep.subr.mxu0 0.0
    %189 = vmatpush1.msra.mxu0 0.0
    %190 = vmatprep.subr.mxu0 0.0
    %191 = vmatpush1.msra.mxu0 0.0
    %192 = vmatprep.subr.mxu0 0.0
    %193 = vmatpush1.msra.mxu0 0.0
    %194 = vmatprep.subr.mxu0 0.0
    %195 = vmatpush1.msra.mxu0 0.0
    %196 = vmatprep.subr.mxu0 0.0
    %197 = vmatpush1.msra.mxu0 0.0
    %198 = vmatprep.subr.mxu0 0.0
    %199 = vmatpush1.msra.mxu0 0.0
    %200 = vmatprep.subr.mxu0 0.0
    %201 = vmatpush1.msra.mxu0 0.0
    %202 = vmatprep.subr.mxu0 0.0
    %203 = vmatpush1.msra.mxu0 0.0
    %204 = vmatprep.subr.mxu0 0.0
    %205 = vmatpush1.msra.mxu0 0.0
    %206 = vmatprep.subr.mxu0 0.0
    %207 = vmatpush1.msra.mxu0 0.0
    %208 = vmatprep.mubr.f32.mxu0 0.0
    %209 = vmatmul.mubr.f32.gmra.mrb[0].mxu0 %v138
    %v210 = vpop.f32.mrb[0].mxu0
    %v211 = vadd.f32 %v134, %v210
    %v212 = vpop.f32.mrb[0].mxu0
    %213 = vdwg.mxu0
    %v214 = vmax.f32 %v211, 0.0
    %v215 = vld [vmem:[%s5] sm:$0x3]
    %v216 = vld [vmem:[%s6] sm:$0x3]
    %218 = vset.pattern.permute.xlu0 0
    %219 = vperm.xlu0 %218, %v216
    %v220 = vpop.permute.xlu0 %219
    %vm222 = vcmask 39936
    %v224 = vsel %vm222, %v215, 0
    %vm226 = vcmask 1044480
    %v228 = vsel %vm226, %v214, 0
    %230 = vmatprep.subr.mxu0 0.0
    %231 = vmatpush1.msra.mxu0 %v228
    %232 = vmatprep.subr.mxu0 0.0
    %233 = vmatpush1.msra.mxu0 0.0
    %234 = vmatprep.subr.mxu0 0.0
    %235 = vmatpush1.msra.mxu0 0.0
    %236 = vmatprep.subr.mxu0 0.0
    %237 = vmatpush1.msra.mxu0 0.0
    %238 = vmatprep.subr.mxu0 0.0
    %239 = vmatpush1.msra.mxu0 0.0
    %240 = vmatprep.subr.mxu0 0.0
    %241 = vmatpush1.msra.mxu0 0.0
    %242 = vmatprep.subr.mxu0 0.0
    %243 = vmatpush1.msra.mxu0 0.0
    %244 = vmatprep.subr.mxu0 0.0
    %245 = vmatpush1.msra.mxu0 0.0
    %246 = vmatprep.subr.mxu0 0.0
    %247 = vmatpush1.msra.mxu0 0.0
    %248 = vmatprep.subr.mxu0 0.0
    %249 = vmatpush1.msra.mxu0 0.0
    %250 = vmatprep.subr.mxu0 0.0
    %251 = vmatpush1.msra.mxu0 0.0
    %252 = vmatprep.subr.mxu0 0.0
    %253 = vmatpush1.msra.mxu0 0.0
    %254 = vmatprep.subr.mxu0 0.0
    %255 = vmatpush1.msra.mxu0 0.0
    %256 = vmatprep.subr.mxu0 0.0
    %257 = vmatpush1.msra.mxu0 0.0
    %258 = vmatprep.subr.mxu0 0.0
    %259 = vmatpush1.msra.mxu0 0.0
    %260 = vmatprep.subr.mxu0 0.0
    %261 = vmatpush1.msra.mxu0 0.0
    %262 = vmatprep.subr.mxu0 0.0
    %263 = vmatpush1.msra.mxu0 0.0
    %264 = vmatprep.subr.mxu0 0.0
    %265 = vmatpush1.msra.mxu0 0.0
    %266 = vmatprep.subr.mxu0 0.0
    %267 = vmatpush1.msra.mxu0 0.0
    %268 = vmatprep.subr.mxu0 0.0
    %269 = vmatpush1.msra.mxu0 0.0
    %270 = vmatprep.subr.mxu0 0.0
    %271 = vmatpush1.msra.mxu0 0.0
    %272 = vmatprep.subr.mxu0 0.0
    %273 = vmatpush1.msra.mxu0 0.0
    %274 = vmatprep.subr.mxu0 0.0
    %275 = vmatpush1.msra.mxu0 0.0
    %276 = vmatprep.subr.mxu0 0.0
    %277 = vmatpush1.msra.mxu0 0.0
    %278 = vmatprep.subr.mxu0 0.0
    %279 = vmatpush1.msra.mxu0 0.0
    %280 = vmatprep.subr.mxu0 0.0
    %281 = vmatpush1.msra.mxu0 0.0
    %282 = vmatprep.subr.mxu0 0.0
    %283 = vmatpush1.msra.mxu0 0.0
    %284 = vmatprep.subr.mxu0 0.0
    %285 = vmatpush1.msra.mxu0 0.0
    %286 = vmatprep.subr.mxu0 0.0
    %287 = vmatpush1.msra.mxu0 0.0
    %288 = vmatprep.subr.mxu0 0.0
    %289 = vmatpush1.msra.mxu0 0.0
    %290 = vmatprep.subr.mxu0 0.0
    %291 = vmatpush1.msra.mxu0 0.0
    %292 = vmatprep.subr.mxu0 0.0
    %293 = vmatpush1.msra.mxu0 0.0
    %294 = vmatprep.mubr.f32.mxu0 0.0
    %295 = vmatmul.mubr.f32.gmra.mrb[0].mxu0 %v224
    %v296 = vpop.f32.mrb[0].mxu0
    %v297 = vadd.f32 %v220, %v296
    %v298 = vpop.f32.mrb[0].mxu0
    %299 = vdwg.mxu0
    %vm300 = vcmask 58368
    %301 = vst.msk [vmem:[#allocation2] sm:$0x3] %vm300, %v297
    // Predicated region
    $region30: #{mlp_forward.1} parent=1 // pred_check
      _
    $region31: #{mlp_forward.1} parent=1 // pred_check_branch
      %303 = sbr.rel (0) target = $region33
    $region32: #{mlp_forward.1} parent=1 // pred_region
      %s305 = ssub.s32 32, 32
      %306 = vsyncadd [#allocation3], %s305
      %s308 = sshll.u32 [#allocation2], 4
      %s309 = int_to_ptr.vmem [resolvable:$true] %s308
      %311 = dma.vmem_to_hbm [thread:$0]  %s309, 32, %s7, [#allocation3]
    $region33: #{mlp_forward.1} parent=1 // pred_fallthru
      _
    // Predicated region
    $region34: #{mlp_forward.1} parent=1 // pred_check
      _
    $region35: #{mlp_forward.1} parent=1 // pred_check_branch
      %313 = sbr.rel (0) target = $region37
    $region36: #{mlp_forward.1} parent=1 // pred_region
      %314 = dma.done [#allocation3], 32
    $region37: #{mlp_forward.1} parent=1 // pred_fallthru
      _
    %315 = vsyncpa [#allocation3], 1

</llo_original>
